<compile_context>
chip_gen: v5e
topology: v5e:2x2
jax: 0.10.0
libtpu: 0.0.40
codegen_flags: <defaults>
</compile_context>

<pallas_src>
import jax
import jax.numpy as jnp
from jax.experimental import pallas as pl
from jax.experimental.pallas import tpu as pltpu


def attention_kernel(h_ref, a_ref, w1h_ref, w1a_ref, b1_ref, w2_ref, b2_ref, o_ref):
    # h_ref : (B, H)      decoder hidden states
    # a_ref : (B*S, H)    encoder annotations, flattened over (batch, seq)
    # w1h   : (H, H)      rows of W1 that multiply the (expanded) hidden state
    # w1a   : (H, H)      rows of W1 that multiply the annotations
    # b1    : (1, H)
    # w2    : (1, H)      second-layer weight stored as a lane-dense row
    # b2    : (1, 1)
    # o_ref : (B, S)      softmax attention weights (S on the lane axis)
    B, S = o_ref.shape
    H = h_ref.shape[-1]

    # First linear layer: concat split into two MXU matmuls.
    hid_proj = jnp.dot(h_ref[...], w1h_ref[...],
                       preferred_element_type=jnp.float32)          # (B, H)
    ann_proj = jnp.dot(a_ref[...], w1a_ref[...],
                       preferred_element_type=jnp.float32)          # (B*S, H)

    # Add the per-batch hidden contribution (computed once, broadcast over S) + bias.
    pre = ann_proj.reshape(B, S, H) + hid_proj[:, None, :] + b1_ref[...][None]
    act = jnp.maximum(pre, 0.0)                                     # ReLU, (B, S, H)

    # Second layer (H -> 1) as VPU multiply + lane reduction (avoids N=1 MXU matmul),
    # producing lane-dense scores with S on the last axis.
    scores = jnp.sum(act * w2_ref[...][None], axis=-1) + b2_ref[...]  # (B, S)

    # Softmax over the sequence dimension, reduced along the lane (last) axis.
    m = jnp.max(scores, axis=-1, keepdims=True)                     # (B, 1)
    e = jnp.exp(scores - m)                                         # (B, S)
    denom = jnp.sum(e, axis=-1, keepdims=True)                      # (B, 1)
    o_ref[...] = (e * pl.reciprocal(denom, approx=True)).astype(o_ref.dtype)


def attention_forward(hidden, annotations, w1, b1, w2, b2):
    """hidden: (B, H) f32, annotations: (B, S, H) f32.
    w1: (2H, H) (transposed PyTorch Linear(2H->H) weight), b1: (H,)
    w2: (H, 1)  (transposed PyTorch Linear(H->1) weight),  b2: (1,)
    Returns: (B, S, 1) softmax attention weights (same semantics as the PyTorch module)."""
    B, S, H = annotations.shape
    assert hidden.shape == (B, H)
    assert w1.shape == (2 * H, H)

    # Split W1 to match torch.cat((expanded_hidden, annotations), 2) order.
    w1h = w1[:H, :]
    w1a = w1[H:, :]
    b1_2d = b1.reshape(1, H)
    w2_row = w2.reshape(1, H)          # lane-dense row for the VPU multiply+reduce
    b2_2d = b2.reshape(1, 1)
    a_flat = annotations.reshape(B * S, H)   # free XLA reshape; rows = (batch, seq)

    weights = pl.pallas_call(
        attention_kernel,
        out_shape=jax.ShapeDtypeStruct((B, S), jnp.float32),
        grid_spec=pltpu.PrefetchScalarGridSpec(
            num_scalar_prefetch=0,
            grid=(1,),  # B*S is tiny -> one step does all the work, no per-step overhead
            in_specs=[
                pl.BlockSpec((B, H), lambda i: (0, 0)),        # hidden
                pl.BlockSpec((B * S, H), lambda i: (0, 0)),    # annotations (flattened rows)
                pl.BlockSpec((H, H), lambda i: (0, 0)),        # w1h
                pl.BlockSpec((H, H), lambda i: (0, 0)),        # w1a
                pl.BlockSpec((1, H), lambda i: (0, 0)),        # b1
                pl.BlockSpec((1, H), lambda i: (0, 0)),        # w2 row
                pl.BlockSpec((1, 1), lambda i: (0, 0)),        # b2
            ],
            out_specs=pl.BlockSpec((B, S), lambda i: (0, 0)),  # lane-dense output
        ),
        compiler_params=pltpu.CompilerParams(
            dimension_semantics=("arbitrary",),
        ),
    )(hidden, a_flat, w1h, w1a, b1_2d, w2_row, b2_2d)

    # PyTorch module returns (B, S, 1); keep the lane-dense layout inside the kernel
    # and restore the trailing singleton dim here.
    return weights.reshape(B, S, 1)


def attention_reference(hidden, annotations, w1, b1, w2, b2):
    """Plain-JAX reference mirroring the PyTorch forward pass exactly."""
    B, S, H = annotations.shape
    expanded_hidden = jnp.broadcast_to(hidden[:, None, :], (B, S, H))
    concat = jnp.concatenate([expanded_hidden, annotations], axis=2)      # (B, S, 2H)
    flat = concat.reshape(-1, 2 * H)
    h1 = jnp.maximum(flat @ w1 + b1, 0.0)                                  # Linear + ReLU
    scores = (h1 @ w2 + b2).reshape(B, S, 1)                               # Linear(H->1)
    return jax.nn.softmax(scores, axis=1)


if __name__ == "__main__":
    B, S, H = 2, 8, 32

    key = jax.random.PRNGKey(0)
    k_hid, k_ann, k_w1, k_b1, k_w2, k_b2 = jax.random.split(key, 6)

    hidden = jax.random.normal(k_hid, (B, H), dtype=jnp.float32)
    annotations = jax.random.normal(k_ann, (B, S, H), dtype=jnp.float32)

    # Deterministic parameter init (PyTorch-Linear-style uniform bounds).
    bound1 = 1.0 / jnp.sqrt(2.0 * H)
    w1 = jax.random.uniform(k_w1, (2 * H, H), jnp.float32, -bound1, bound1)
    b1 = jax.random.uniform(k_b1, (H,), jnp.float32, -bound1, bound1)
    bound2 = 1.0 / jnp.sqrt(float(H))
    w2 = jax.random.uniform(k_w2, (H, 1), jnp.float32, -bound2, bound2)
    b2 = jax.random.uniform(k_b2, (1,), jnp.float32, -bound2, bound2)

    out = attention_forward(hidden, annotations, w1, b1, w2, b2)
    out = jax.block_until_ready(out)

    ref = attention_reference(hidden, annotations, w1, b1, w2, b2)
    assert out.shape == (B, S, 1)
    # Slightly relaxed tolerance: the softmax denominator uses the EUP approximate
    # reciprocal (pl.reciprocal(..., approx=True)).
    assert jnp.allclose(out, ref, atol=1e-3, rtol=1e-3), "Pallas output mismatch vs reference"
    # Softmax rows must sum to ~1 over the seq dimension.
    assert jnp.allclose(jnp.sum(out, axis=1), 1.0, atol=1e-3)

    print("KERNEL_OK")
</pallas_src>

<mosaic_0001>
module attributes {stable_mosaic.version = 11 : i64} {
  func.func @attention_kernel(%arg0: i32, %arg1: memref<2x32xf32, #tpu.memory_space<vmem>>, %arg2: memref<16x32xf32, #tpu.memory_space<vmem>>, %arg3: memref<32x32xf32, #tpu.memory_space<vmem>>, %arg4: memref<32x32xf32, #tpu.memory_space<vmem>>, %arg5: memref<1x32xf32, #tpu.memory_space<vmem>>, %arg6: memref<1x32xf32, #tpu.memory_space<vmem>>, %arg7: memref<1x1xf32, #tpu.memory_space<vmem>>, %arg8: memref<2x8xf32, #tpu.memory_space<vmem>>) attributes {dimension_semantics = [#tpu.dimension_semantics<arbitrary>], iteration_bounds = array<i64: 1>, scalar_prefetch = 0 : i64, scratch_operands = 0 : i64, tpu.core_type = #tpu.core_type<tc>, window_params = [{pipeline_mode = #tpu.pipeline_mode<synchronous>, transform_indices = @transform_0, window_bounds = array<i64: 2, 32>}, {pipeline_mode = #tpu.pipeline_mode<synchronous>, transform_indices = @transform_1, window_bounds = array<i64: 16, 32>}, {pipeline_mode = #tpu.pipeline_mode<synchronous>, transform_indices = @transform_2, window_bounds = array<i64: 32, 32>}, {pipeline_mode = #tpu.pipeline_mode<synchronous>, transform_indices = @transform_3, window_bounds = array<i64: 32, 32>}, {pipeline_mode = #tpu.pipeline_mode<synchronous>, transform_indices = @transform_4, window_bounds = array<i64: 1, 32>}, {pipeline_mode = #tpu.pipeline_mode<synchronous>, transform_indices = @transform_5, window_bounds = array<i64: 1, 32>}, {pipeline_mode = #tpu.pipeline_mode<synchronous>, transform_indices = @transform_6, window_bounds = array<i64: 1, 1>}, {pipeline_mode = #tpu.pipeline_mode<synchronous>, transform_indices = @transform_7, window_bounds = array<i64: 2, 8>}]} {
    %c0 = arith.constant 0 : index
    %c0_0 = arith.constant 0 : index
    %0 = vector.load %arg1[%c0, %c0_0] : memref<2x32xf32, #tpu.memory_space<vmem>>, vector<2x32xf32>
    %c0_1 = arith.constant 0 : index
    %c0_2 = arith.constant 0 : index
    %1 = vector.load %arg3[%c0_1, %c0_2] : memref<32x32xf32, #tpu.memory_space<vmem>>, vector<32x32xf32>
    %cst = arith.constant dense<0.000000e+00> : vector<2x32xf32>
    %2 = tpu.matmul %0, %1, %cst {dimension_numbers = #tpu.dot_dimension_numbers<[1], [0], [0], [1], [0, 0, 1, 1], [], []>} : vector<2x32xf32>, vector<32x32xf32>, vector<2x32xf32> -> vector<2x32xf32>
    %c0_3 = arith.constant 0 : index
    %c0_4 = arith.constant 0 : index
    %3 = vector.load %arg2[%c0_3, %c0_4] : memref<16x32xf32, #tpu.memory_space<vmem>>, vector<16x32xf32>
    %c0_5 = arith.constant 0 : index
    %c0_6 = arith.constant 0 : index
    %4 = vector.load %arg4[%c0_5, %c0_6] : memref<32x32xf32, #tpu.memory_space<vmem>>, vector<32x32xf32>
    %cst_7 = arith.constant dense<0.000000e+00> : vector<16x32xf32>
    %5 = tpu.matmul %3, %4, %cst_7 {dimension_numbers = #tpu.dot_dimension_numbers<[1], [0], [0], [1], [0, 0, 1, 1], [], []>} : vector<16x32xf32>, vector<32x32xf32>, vector<16x32xf32> -> vector<16x32xf32>
    %6 = vector.shape_cast %5 : vector<16x32xf32> to vector<2x8x32xf32>
    %7 = vector.shape_cast %2 : vector<2x32xf32> to vector<2x1x32xf32>
    %8 = vector.broadcast %7 : vector<2x1x32xf32> to vector<2x8x32xf32>
    %9 = arith.addf %6, %8 : vector<2x8x32xf32>
    %c0_8 = arith.constant 0 : index
    %c0_9 = arith.constant 0 : index
    %10 = vector.load %arg5[%c0_8, %c0_9] : memref<1x32xf32, #tpu.memory_space<vmem>>, vector<1x32xf32>
    %11 = vector.shape_cast %10 : vector<1x32xf32> to vector<1x1x32xf32>
    %12 = vector.broadcast %11 : vector<1x1x32xf32> to vector<2x8x32xf32>
    %13 = arith.addf %9, %12 : vector<2x8x32xf32>
    %cst_10 = arith.constant 0.000000e+00 : f32
    %14 = vector.broadcast %cst_10 : f32 to vector<2x8x32xf32>
    %15 = arith.maximumf %13, %14 : vector<2x8x32xf32>
    %c0_11 = arith.constant 0 : index
    %c0_12 = arith.constant 0 : index
    %16 = vector.load %arg6[%c0_11, %c0_12] : memref<1x32xf32, #tpu.memory_space<vmem>>, vector<1x32xf32>
    %17 = vector.shape_cast %16 : vector<1x32xf32> to vector<1x1x32xf32>
    %18 = vector.broadcast %17 : vector<1x1x32xf32> to vector<2x8x32xf32>
    %19 = arith.mulf %15, %18 : vector<2x8x32xf32>
    %cst_13 = arith.constant dense<0.000000e+00> : vector<2x8xf32>
    %20 = vector.multi_reduction <add>, %19, %cst_13 [2] : vector<2x8x32xf32> to vector<2x8xf32>
    %c0_14 = arith.constant 0 : index
    %c0_15 = arith.constant 0 : index
    %21 = vector.load %arg7[%c0_14, %c0_15] : memref<1x1xf32, #tpu.memory_space<vmem>>, vector<1x1xf32>
    %22 = vector.broadcast %21 : vector<1x1xf32> to vector<2x8xf32>
    %23 = arith.addf %20, %22 : vector<2x8xf32>
    %cst_16 = arith.constant dense<0xFF800000> : vector<2xf32>
    %24 = vector.multi_reduction <maximumf>, %23, %cst_16 [1] : vector<2x8xf32> to vector<2xf32>
    %25 = vector.shape_cast %24 : vector<2xf32> to vector<2x1xf32>
    %26 = vector.broadcast %25 : vector<2x1xf32> to vector<2x8xf32>
    %27 = arith.subf %23, %26 : vector<2x8xf32>
    %28 = math.exp %27 : vector<2x8xf32>
    %cst_17 = arith.constant dense<0.000000e+00> : vector<2xf32>
    %29 = vector.multi_reduction <add>, %28, %cst_17 [1] : vector<2x8xf32> to vector<2xf32>
    %30 = vector.shape_cast %29 : vector<2xf32> to vector<2x1xf32>
    %31 = tpu.reciprocal %30 {approx = true} : vector<2x1xf32> -> vector<2x1xf32>
    %32 = vector.broadcast %31 : vector<2x1xf32> to vector<2x8xf32>
    %33 = arith.mulf %28, %32 : vector<2x8xf32>
    %c0_18 = arith.constant 0 : index
    %c0_19 = arith.constant 0 : index
    %34 = vector.load %arg8[%c0_18, %c0_19] : memref<2x8xf32, #tpu.memory_space<vmem>>, vector<2x8xf32>
    tpu.vector_store %arg8[%c0_18, %c0_19], %33 {strides = array<i32>} : memref<2x8xf32, #tpu.memory_space<vmem>>, vector<2x8xf32>,
    return
  }
  func.func @transform_0(%arg0: i32) -> (i32, i32) {
    %c0_i32 = arith.constant 0 : i32
    %c0_i32_0 = arith.constant 0 : i32
    %c0_i32_1 = arith.constant 0 : i32
    return %c0_i32, %c0_i32_0 : i32, i32
  }
  func.func @transform_1(%arg0: i32) -> (i32, i32) {
    %c0_i32 = arith.constant 0 : i32
    %c0_i32_0 = arith.constant 0 : i32
    %c0_i32_1 = arith.constant 0 : i32
    return %c0_i32, %c0_i32_0 : i32, i32
  }
  func.func @transform_2(%arg0: i32) -> (i32, i32) {
    %c0_i32 = arith.constant 0 : i32
    %c0_i32_0 = arith.constant 0 : i32
    %c0_i32_1 = arith.constant 0 : i32
    return %c0_i32, %c0_i32_0 : i32, i32
  }
  func.func @transform_3(%arg0: i32) -> (i32, i32) {
    %c0_i32 = arith.constant 0 : i32
    %c0_i32_0 = arith.constant 0 : i32
    %c0_i32_1 = arith.constant 0 : i32
    return %c0_i32, %c0_i32_0 : i32, i32
  }
  func.func @transform_4(%arg0: i32) -> (i32, i32) {
    %c0_i32 = arith.constant 0 : i32
    %c0_i32_0 = arith.constant 0 : i32
    %c0_i32_1 = arith.constant 0 : i32
    return %c0_i32, %c0_i32_0 : i32, i32
  }
  func.func @transform_5(%arg0: i32) -> (i32, i32) {
    %c0_i32 = arith.constant 0 : i32
    %c0_i32_0 = arith.constant 0 : i32
    %c0_i32_1 = arith.constant 0 : i32
    return %c0_i32, %c0_i32_0 : i32, i32
  }
  func.func @transform_6(%arg0: i32) -> (i32, i32) {
    %c0_i32 = arith.constant 0 : i32
    %c0_i32_0 = arith.constant 0 : i32
    %c0_i32_1 = arith.constant 0 : i32
    return %c0_i32, %c0_i32_0 : i32, i32
  }
  func.func @transform_7(%arg0: i32) -> (i32, i32) {
    %c0_i32 = arith.constant 0 : i32
    %c0_i32_0 = arith.constant 0 : i32
    %c0_i32_1 = arith.constant 0 : i32
    return %c0_i32, %c0_i32_0 : i32, i32
  }
}

</mosaic_0001>

<llo_original>
// kernel: tpu_custom_call.1
$region0: #{tpu_custom_call.1}
  #allocation0 [shape = 'u32[]', space=smem, size = 0x4, offset = 0x4, fixed_abs, tag = 'smem constant byte address 0x4 - core index']
  #allocation1 [shape = 'u32[72,128]{1,0:T(1,128)}', space=vmem, size = 0x9000, scoped, tag = 'internal scratch']
  #allocation2 [shape = 'f32[1,1]{1,0:T(1,128)S(1)}', space=vmem, size = 0x200, scoped, tag = 'scoped memory for tpu_custom_call.1']
  %s0 = inlined_call_operand.vmem [shape: f32[2,32], index: 0, kind: input, shape index: {}]
  %s1 = inlined_call_operand.hbm [shape: f32[16,32], index: 1, kind: input, shape index: {}]
  %s2 = inlined_call_operand.hbm [shape: f32[32,32], index: 2, kind: input, shape index: {}]
  %s3 = inlined_call_operand.hbm [shape: f32[32,32], index: 3, kind: input, shape index: {}]
  %s4 = inlined_call_operand.vmem [shape: f32[1,32], index: 4, kind: input, shape index: {}]
  %s5 = inlined_call_operand.vmem [shape: f32[1,32], index: 5, kind: input, shape index: {}]
  %s6 = inlined_call_operand.<no memory space> [shape: f32[1,1], index: 6, kind: input, shape index: {}]
  %s7 = inlined_call_operand.hbm [shape: f32[2,8], index: 7, kind: output, shape index: {}]
  %s8 = sld [smem:[#allocation0]]
  $region50: #{tpu_custom_call.1} parent=0
    _
  %s10 = ssub.s32 1, %s8
  %s11 = scalar_select 0, %s10, %s8
  %v12 = vstv %s6
  %13 = vst [vmem:[#allocation2] sm:$0x1] %v12
  $region1: #{tpu_custom_call.1} parent=0
    #allocation3 [shape = 'u8[8192]{0}', space=vmem, size = 0x2000, scoped, tag = 'input window, operand 1, single buffered']
    #allocation4 [shape = 's32[1]{0}', space=sflag, size = 0x4, scoped, tag = 'scoped memory for tpu_custom_call.1']
    #allocation5 [shape = 's32[1]{0}', space=sflag, size = 0x4, scoped, tag = 'scoped memory for tpu_custom_call.1']
    #allocation6 [shape = 'u8[16384]{0}', space=vmem, size = 0x4000, scoped, tag = 'input window, operand 2, single buffered']
    #allocation7 [shape = 's32[1]{0}', space=sflag, size = 0x4, scoped, tag = 'scoped memory for tpu_custom_call.1']
    #allocation8 [shape = 'u8[16384]{0}', space=vmem, size = 0x4000, scoped, tag = 'input window, operand 3, single buffered']
    #allocation9 [shape = 'u8[1024]{0}', space=vmem, size = 0x400, scoped, tag = 'output window, operand 0, single buffered']
    %14 = vsyncpa [#allocation4], 0
    %15 = vsyncpa [#allocation7], 0
    %16 = vsyncpa [#allocation5], 0
    // Predicated region
    $region2: #{tpu_custom_call.1} parent=1 // pred_check
      _
    $region3: #{tpu_custom_call.1} parent=1 // pred_check_branch
      %18 = sbr.rel (0) target = $region5
    $region4: #{tpu_custom_call.1} parent=1 // pred_region
      _
    $region5: #{tpu_custom_call.1} parent=1 // pred_fallthru
      _
    // Predicated region
    $region6: #{tpu_custom_call.1} parent=1 // pred_check
      _
    $region7: #{tpu_custom_call.1} parent=1 // pred_check_branch
      %20 = sbr.rel (0) target = $region9
    $region8: #{tpu_custom_call.1} parent=1 // pred_region
      %22 = vsyncadd [#allocation4], 0
      %s23 = sshll.u32 %s1, 4
      %s24 = int_to_ptr.hbm [resolvable:$true] %s23
      %s25 = sshll.u32 [#allocation3], 4
      %s26 = int_to_ptr.vmem [resolvable:$true] %s25
      %31 = dma.hbm_to_vmem [thread:$0]  %s24, 256, %s26, [#allocation4], 128, 128, 8
    $region9: #{tpu_custom_call.1} parent=1 // pred_fallthru
      _
    // Predicated region
    $region10: #{tpu_custom_call.1} parent=1 // pred_check
      _
    $region11: #{tpu_custom_call.1} parent=1 // pred_check_branch
      %33 = sbr.rel (0) target = $region13
    $region12: #{tpu_custom_call.1} parent=1 // pred_region
      %35 = vsyncadd [#allocation7], 0
      %s36 = sshll.u32 %s2, 4
      %s37 = int_to_ptr.hbm [resolvable:$true] %s36
      %s38 = sshll.u32 [#allocation6], 4
      %s39 = int_to_ptr.vmem [resolvable:$true] %s38
      %44 = dma.hbm_to_vmem [thread:$0]  %s37, 512, %s39, [#allocation7], 128, 128, 8
    $region13: #{tpu_custom_call.1} parent=1 // pred_fallthru
      _
    // Predicated region
    $region14: #{tpu_custom_call.1} parent=1 // pred_check
      _
    $region15: #{tpu_custom_call.1} parent=1 // pred_check_branch
      %46 = sbr.rel (0) target = $region17
    $region16: #{tpu_custom_call.1} parent=1 // pred_region
      %48 = vsyncadd [#allocation7], 0
      %s49 = sshll.u32 %s3, 4
      %s50 = int_to_ptr.hbm [resolvable:$true] %s49
      %s51 = sshll.u32 [#allocation8], 4
      %s52 = int_to_ptr.vmem [resolvable:$true] %s51
      %57 = dma.hbm_to_vmem [thread:$0]  %s50, 512, %s52, [#allocation7], 128, 128, 8
    $region17: #{tpu_custom_call.1} parent=1 // pred_fallthru
      _
    // Predicated region
    $region18: #{tpu_custom_call.1} parent=1 // pred_check
      _
    $region19: #{tpu_custom_call.1} parent=1 // pred_check_branch
      %59 = sbr.rel (0) target = $region21
    $region20: #{tpu_custom_call.1} parent=1 // pred_region
      _
    $region21: #{tpu_custom_call.1} parent=1 // pred_fallthru
      _
    // Predicated region
    $region22: #{tpu_custom_call.1} parent=1 // pred_check
      _
    $region23: #{tpu_custom_call.1} parent=1 // pred_check_branch
      %61 = sbr.rel (0) target = $region25
    $region24: #{tpu_custom_call.1} parent=1 // pred_region
      _
    $region25: #{tpu_custom_call.1} parent=1 // pred_fallthru
      _
    // Predicated region
    $region26: #{tpu_custom_call.1} parent=1 // pred_check
      _
    $region27: #{tpu_custom_call.1} parent=1 // pred_check_branch
      %63 = sbr.rel (0) target = $region29
    $region28: #{tpu_custom_call.1} parent=1 // pred_region
      _
    $region29: #{tpu_custom_call.1} parent=1 // pred_fallthru
      _
    // Predicated region
    $region30: #{tpu_custom_call.1} parent=1 // pred_check
      _
    $region31: #{tpu_custom_call.1} parent=1 // pred_check_branch
      %65 = sbr.rel (0) target = $region33
    $region32: #{tpu_custom_call.1} parent=1 // pred_region
      %67 = dma.done [#allocation4], 256
    $region33: #{tpu_custom_call.1} parent=1 // pred_fallthru
      _
    // Predicated region
    $region34: #{tpu_custom_call.1} parent=1 // pred_check
      _
    $region35: #{tpu_custom_call.1} parent=1 // pred_check_branch
      %69 = sbr.rel (0) target = $region37
    $region36: #{tpu_custom_call.1} parent=1 // pred_region
      %71 = dma.done [#allocation7], 512
    $region37: #{tpu_custom_call.1} parent=1 // pred_fallthru
      _
    // Predicated region
    $region38: #{tpu_custom_call.1} parent=1 // pred_check
      _
    $region39: #{tpu_custom_call.1} parent=1 // pred_check_branch
      %73 = sbr.rel (0) target = $region41
    $region40: #{tpu_custom_call.1} parent=1 // pred_region
      %75 = dma.done [#allocation7], 512
    $region41: #{tpu_custom_call.1} parent=1 // pred_fallthru
      _
    %v76 = vld [vmem:[%s0] sm:$0x3]
    %v77 = vld [vmem:[#allocation6] sm:$0xff]
    %v78 = vld [vmem:[#allocation6 + $0x8] sm:$0xff]
    %v79 = vld [vmem:[#allocation6 + $0x10] sm:$0xff]
    %v80 = vld [vmem:[#allocation6 + $0x18] sm:$0xff]
    %vm81 = vcmask 261120
    %v83 = vsel %vm81, %v76, 0
    %85 = vmatpush.msra.mxu0 0.0
    %86 = vmatpush.msra.mxu0 0.0
    %87 = vmatpush.msra.mxu0 0.0
    %88 = vmatpush.msra.mxu0 0.0
    %89 = vmatpush.msra.mxu0 0.0
    %90 = vmatpush.msra.mxu0 0.0
    %91 = vmatpush.msra.mxu0 0.0
    %92 = vmatpush.msra.mxu0 0.0
    %93 = vmatpush.msra.mxu0 0.0
    %94 = vmatpush.msra.mxu0 0.0
    %95 = vmatpush.msra.mxu0 0.0
    %96 = vmatpush.msra.mxu0 0.0
    %97 = vmatpush.msra.mxu0 %v80
    %98 = vmatpush.msra.mxu0 %v79
    %99 = vmatpush.msra.mxu0 %v78
    %100 = vmatpush.msra.mxu0 %v77
    %101 = vmatmul.f32.gmra.mxu0 %v83
    %v102 = vpop.f32.mrf.mxu0
    %v103 = vadd.f32 0.0, %v102
    %104 = vdwg.mxu0
    %v105 = vld [vmem:[#allocation3] sm:$0xff]
    %v106 = vld [vmem:[#allocation3 + $0x8] sm:$0xff]
    %v107 = vld [vmem:[#allocation8] sm:$0xff]
    %v108 = vld [vmem:[#allocation8 + $0x8] sm:$0xff]
    %v109 = vld [vmem:[#allocation8 + $0x10] sm:$0xff]
    %v110 = vld [vmem:[#allocation8 + $0x18] sm:$0xff]
    %v112 = vsel %vm81, %v105, 0
    %v115 = vsel %vm81, %v106, 0
    %117 = vmatpush.msra.mxu0 0.0
    %118 = vmatpush.msra.mxu0 0.0
    %119 = vmatpush.msra.mxu0 0.0
    %120 = vmatpush.msra.mxu0 0.0
    %121 = vmatpush.msra.mxu0 0.0
    %122 = vmatpush.msra.mxu0 0.0
    %123 = vmatpush.msra.mxu0 0.0
    %124 = vmatpush.msra.mxu0 0.0
    %125 = vmatpush.msra.mxu0 0.0
    %126 = vmatpush.msra.mxu0 0.0
    %127 = vmatpush.msra.mxu0 0.0
    %128 = vmatpush.msra.mxu0 0.0
    %129 = vmatpush.msra.mxu0 %v110
    %130 = vmatpush.msra.mxu0 %v109
    %131 = vmatpush.msra.mxu0 %v108
    %132 = vmatpush.msra.mxu0 %v107
    %133 = vmatmul.f32.gmra.mxu0 %v112
    %v134 = vpop.f32.mrf.mxu0
    %v135 = vadd.f32 0.0, %v134
    %136 = vmatmul.f32.gmra.mxu0 %v115
    %v137 = vpop.f32.mrf.mxu0
    %v138 = vadd.f32 0.0, %v137
    %139 = vdwg.mxu0
    %v141 = vrot.slane %v103, 1
    %v142 = vperm.slane %v103, 0
    %v143 = vperm.slane %v141, 0
    %v146 = vadd.f32 %v135, %v142
    %v147 = vadd.f32 %v138, %v143
    %v148 = vld [vmem:[%s4] sm:$0x1]
    %v150 = vperm.slane %v148, 0
    %v152 = vadd.f32 %v146, %v150
    %v153 = vadd.f32 %v147, %v150
    %v154 = vmax.f32 %v152, 0.0
    %v155 = vmax.f32 %v153, 0.0
    %v156 = vld [vmem:[%s5] sm:$0x1]
    %v158 = vperm.slane %v156, 0
    %v160 = vmul.f32 %v154, %v158
    %v161 = vmul.f32 %v155, %v158
    %v162 = vsel %vm81, %v160, 0.0
    %163 = vadd.xlane.f32.xlu0 %v162
    %v164 = vpop.xlane.xlu0 %163
    %v165 = vsel %vm81, %v161, 0.0
    %166 = vadd.xlane.f32.xlu0 %v165
    %v167 = vpop.xlane.xlu0 %166
    %v168 = vld [vmem:[#allocation2] sm:$0x1]
    %v170 = vperm.slane %v168, 0
    %171 = vset.pattern.permute.xlu0 0
    %172 = vperm.xlu0 %171, %v170
    %v173 = vpop.permute.xlu0 %172
    %v175 = vadd.f32 %v164, %v173
    %v176 = vadd.f32 %v167, %v173
    %v179 = vlaneseq
    %v180 = vand.u32 %v179, 127
    %v181 = vperm.slane %v175, %v180
    %v182 = vperm.slane %v176, %v180
    %vm183 = vcmask 1041409
    %v184 = vsel %vm183, %v182, %v181
    %vm186 = vcmask 58368
    %v187 = vsel %vm186, %v184, -inf
    %188 = vmax.xlane.f32.xlu0 %v187
    %v189 = vpop.xlane.xlu0 %188
    %v191 = vperm.slane %v189, 0
    %v192 = vperm.slane %v189, 1
    %v195 = vsub.f32 %v175, %v191
    %v196 = vsub.f32 %v176, %v192
    %v197 = vmul.f32 %v195, 1.442695
    %v198 = vpow.pop %v197
    %v199 = vmul.f32 %v196, 1.442695
    %v200 = vpow.pop %v199
    %203 = vset.pattern.permute.xlu0 0
    %204 = vperm.xlu0 %203, %v198
    %v205 = vpop.permute.xlu0 %204
    %206 = vset.pattern.permute.xlu0 0
    %207 = vperm.xlu0 %206, %v200
    %v208 = vpop.permute.xlu0 %207
    %v209 = vperm.slane %v205, %v180
    %v210 = vperm.slane %v208, %v180
    %v211 = vsel %vm183, %v210, %v209
    %v213 = vsel %vm186, %v211, 0.0
    %214 = vadd.xlane.f32.xlu0 %v213
    %v215 = vpop.xlane.xlu0 %214
    %v216 = vrcp.pop %v215
    %v218 = vperm.slane %v216, 0
    %v219 = vperm.slane %v216, 1
    %v222 = vmul.f32 %v198, %v218
    %v223 = vmul.f32 %v200, %v219
    %226 = vset.pattern.permute.xlu0 0
    %227 = vperm.xlu0 %226, %v222
    %v228 = vpop.permute.xlu0 %227
    %229 = vset.pattern.permute.xlu0 0
    %230 = vperm.xlu0 %229, %v223
    %v231 = vpop.permute.xlu0 %230
    %v232 = vperm.slane %v228, %v180
    %v233 = vperm.slane %v231, %v180
    %v234 = vsel %vm183, %v233, %v232
    %236 = vst.msk [vmem:[#allocation9] sm:$0x3] %vm186, %v234
    // Predicated region
    $region42: #{tpu_custom_call.1} parent=1 // pred_check
      _
    $region43: #{tpu_custom_call.1} parent=1 // pred_check_branch
      %238 = sbr.rel (0) target = $region45
    $region44: #{tpu_custom_call.1} parent=1 // pred_region
      %240 = vsyncadd [#allocation5], 0
      %s242 = sshll.u32 [#allocation9], 4
      %s243 = int_to_ptr.vmem [resolvable:$true] %s242
      %s244 = sshll.u32 %s7, 4
      %s245 = int_to_ptr.hbm [resolvable:$true] %s244
      %247 = dma.vmem_to_hbm [thread:$0]  %s243, 32, %s245, [#allocation5]
    $region45: #{tpu_custom_call.1} parent=1 // pred_fallthru
      _
    // Predicated region
    $region46: #{tpu_custom_call.1} parent=1 // pred_check
      _
    $region47: #{tpu_custom_call.1} parent=1 // pred_check_branch
      %249 = sbr.rel (0) target = $region49
    $region48: #{tpu_custom_call.1} parent=1 // pred_region
      %251 = dma.done [#allocation5], 32
    $region49: #{tpu_custom_call.1} parent=1 // pred_fallthru
      _
    %252 = vsyncpa [#allocation4], 1
    %253 = vsyncpa [#allocation7], 1
    %254 = vsyncpa [#allocation5], 1

</llo_original>
